<compile_context>
chip_gen: v7x
topology: tpu7x:2x2x1
jax: 0.10.0
libtpu: 0.0.40
codegen_flags: <defaults>
</compile_context>

<pallas_src>
import jax
import jax.numpy as jnp
from jax.experimental import pallas as pl
from jax.experimental.pallas import tpu as pltpu


def _clipped_q_kernel(x_ref, w1_ref, b1_ref, w2_ref, b2_ref, w3_ref, b3_ref,
                      out_ref):
    E = w1_ref.shape[0]
    tb, d_in = x_ref.shape

    x = x_ref[...]                                            # (tb, d_in) bf16
    xb = jnp.broadcast_to(x[None, :, :], (E, tb, d_in))       # member-batched view

    # Layer 1: per-member (tb, d_in) @ (d_in, H), batched over E on the MXU.
    h = jnp.einsum('ebd,edh->ebh', xb, w1_ref[...],
                   preferred_element_type=jnp.float32)        # (E, tb, H) f32
    h = jnp.maximum(h + b1_ref[...], 0.0)

    # Layer 2: per-member (tb, H) @ (H, H) -- no E^2 block-diagonal weight.
    h = jnp.einsum('ebh,ehk->ebk', h.astype(w2_ref.dtype), w2_ref[...],
                   preferred_element_type=jnp.float32)        # (E, tb, H) f32
    h = jnp.maximum(h + b2_ref[...], 0.0)

    # Layer 3 (output dim 1): VPU multiply + lane reduction instead of a
    # nearly-empty N=1 MXU pass.  w3_ref is (E, 1, H) f32, b3_ref is (E, 1).
    q = jnp.sum(h * w3_ref[...], axis=-1) + b3_ref[...]       # (E, tb) f32

    # Clipped Q-value: min over the ensemble (sublane reduce), emitted as a
    # lane-dense (1, tb) row so the output store / writeback DMA is unmasked.
    out_ref[...] = jnp.min(q, axis=0)[None, :]                # (1, tb)


def pack_params(params, compute_dtype=jnp.bfloat16):
    """One-time packing: cast matmul weights to bf16, reshape biases / w3.

    Hoisted out of the per-call wrapper so no packing work or extra HBM
    traffic happens per inference call.
    """
    w1, b1, w2, b2, w3, b3 = params     # (E,d_in,H),(E,H),(E,H,H),(E,H),(E,H,1),(E,1)
    E, d_in, H = w1.shape
    return (
        w1.astype(compute_dtype),                       # (E, d_in, H)
        b1.reshape(E, 1, H).astype(jnp.float32),        # (E, 1, H)
        w2.astype(compute_dtype),                       # (E, H, H)
        b2.reshape(E, 1, H).astype(jnp.float32),        # (E, 1, H)
        jnp.transpose(w3, (0, 2, 1)).astype(jnp.float32),  # (E, 1, H)  f32, VPU path
        b3.reshape(E, 1).astype(jnp.float32),           # (E, 1)
    )


def _choose_batch_tile(B, E, H, d_in, act_budget_bytes=24 << 20):
    """Largest batch tile that fits a conservative (v7x-safe) activation budget.

    Small batches -> one full-extent tile.  Large batches -> tb is a multiple
    of 128 lanes and capped so there are >= 2 tiles (both v7x TensorCores).
    """
    Bp8 = ((B + 7) // 8) * 8
    if Bp8 <= 256:
        return Bp8
    row_bytes = d_in * 2 + 3 * E * H * 4 + 4            # live bytes per batch row
    cap = max(128, min(2048, (act_budget_bytes // row_bytes) // 128 * 128))
    half = max(128, (((B + 1) // 2 + 127) // 128) * 128)  # aim for >= 2 tiles
    return min(cap, half)


def _vmem_limit_bytes(E, d_in, H, tb, compute_bytes=2):
    """Scoped-VMEM request: resident weights (double-buffered by default) +
    pipelined activation tiles + compiler-scratch headroom."""
    w_bytes = (E * d_in * H + E * H * H) * compute_bytes + 3 * E * H * 4 + E * 4
    act_bytes = tb * d_in * compute_bytes + 3 * E * tb * H * 4 + tb * 4
    need = 2 * w_bytes + 4 * act_bytes + (8 << 20)
    return int(min(max(need, 32 << 20), 48 << 20))       # >= defaults, v7x-safe


def clipped_q_value(obs, act, packed_params, *, batch_tile=None,
                    compute_dtype=jnp.bfloat16):
    """Ensemble MLPs + min-reduction in one Pallas invocation."""
    w1p, b1p, w2p, b2p, w3p, b3p = packed_params
    E, d_in, H = w1p.shape
    B, d_obs = obs.shape
    _, d_act = act.shape
    assert d_obs + d_act == d_in

    # Pre-concatenate inputs (no unaligned W1 row-slicing inside the kernel).
    x = jnp.concatenate([obs, act], axis=-1).astype(compute_dtype)    # (B, d_in)

    tb = batch_tile if batch_tile is not None else _choose_batch_tile(B, E, H, d_in)
    Bp = ((B + tb - 1) // tb) * tb
    if Bp != B:
        x = jnp.pad(x, ((0, Bp - B), (0, 0)))
    nb = Bp // tb

    full3 = lambda i: (0, 0, 0)   # weights: one whole-array block, reused by all tiles

    out = pl.pallas_call(
        _clipped_q_kernel,
        out_shape=jax.ShapeDtypeStruct((1, Bp), jnp.float32),   # lane-dense slab
        grid=(nb,),
        in_specs=[
            pl.BlockSpec((tb, d_in), lambda i: (i, 0)),          # x tile
            pl.BlockSpec((E, d_in, H), full3),                   # W1
            pl.BlockSpec((E, 1, H), full3),                      # b1
            pl.BlockSpec((E, H, H), full3),                      # W2 (per-member)
            pl.BlockSpec((E, 1, H), full3),                      # b2
            pl.BlockSpec((E, 1, H), full3),                      # w3 (f32)
            pl.BlockSpec((E, 1), lambda i: (0, 0)),              # b3
        ],
        out_specs=pl.BlockSpec((1, tb), lambda i: (0, i)),       # (1, tb) row per tile
        compiler_params=pltpu.CompilerParams(
            dimension_semantics=("parallel",),                   # batch tiles independent
            vmem_limit_bytes=_vmem_limit_bytes(E, d_in, H, tb)),
    )(x, w1p, b1p, w2p, b2p, w3p, b3p)

    return out[0, :B]   # (B,), matching the PyTorch QValue output convention


def init_ensemble_params(key, ensemble_size, d_obs, d_act, hidden):
    d_in = d_obs + d_act
    ks = jax.random.split(key, 6)
    scale = 0.1
    w1 = scale * jax.random.normal(ks[0], (ensemble_size, d_in, hidden), jnp.float32)
    b1 = scale * jax.random.normal(ks[1], (ensemble_size, hidden), jnp.float32)
    w2 = scale * jax.random.normal(ks[2], (ensemble_size, hidden, hidden), jnp.float32)
    b2 = scale * jax.random.normal(ks[3], (ensemble_size, hidden), jnp.float32)
    w3 = scale * jax.random.normal(ks[4], (ensemble_size, hidden, 1), jnp.float32)
    b3 = scale * jax.random.normal(ks[5], (ensemble_size, 1), jnp.float32)
    return (w1, b1, w2, b2, w3, b3)


def _reference(obs, act, params):
    """Pure-JAX f32 reference matching the PyTorch module semantics."""
    w1, b1, w2, b2, w3, b3 = params
    x = jnp.concatenate([obs, act], axis=-1)
    qs = []
    for e in range(w1.shape[0]):
        h = jnp.maximum(x @ w1[e] + b1[e], 0.0)
        h = jnp.maximum(h @ w2[e] + b2[e], 0.0)
        qs.append((h @ w3[e] + b3[e])[:, 0])
    return jnp.min(jnp.stack(qs, axis=0), axis=0)


if __name__ == "__main__":
    B, D_OBS, D_ACT, HIDDEN, ENSEMBLE = 8, 24, 8, 32, 2

    key = jax.random.PRNGKey(0)
    k_obs, k_act, k_params = jax.random.split(key, 3)
    obs = jax.random.normal(k_obs, (B, D_OBS), jnp.float32)
    act = jax.random.normal(k_act, (B, D_ACT), jnp.float32)
    params = init_ensemble_params(k_params, ENSEMBLE, D_OBS, D_ACT, HIDDEN)

    packed = pack_params(params)          # hoisted: pack/cast once, reuse per call
    q_min = clipped_q_value(obs, act, packed)
    jax.block_until_ready(q_min)

    ref = _reference(obs, act, params)
    assert q_min.shape == (B,)
    # bf16 weights/activations with f32 accumulation -> loosened tolerance.
    assert jnp.allclose(q_min, ref, atol=2e-2, rtol=2e-2), (q_min, ref)
    print("KERNEL_OK")
</pallas_src>

<mosaic_0001>
module attributes {stable_mosaic.version = 11 : i64} {
  func.func @_clipped_q_kernel(%arg0: i32, %arg1: memref<8x32xbf16, #tpu.memory_space<vmem>>, %arg2: memref<2x32x32xbf16, #tpu.memory_space<vmem>>, %arg3: memref<2x1x32xf32, #tpu.memory_space<vmem>>, %arg4: memref<2x32x32xbf16, #tpu.memory_space<vmem>>, %arg5: memref<2x1x32xf32, #tpu.memory_space<vmem>>, %arg6: memref<2x1x32xf32, #tpu.memory_space<vmem>>, %arg7: memref<2x1xf32, #tpu.memory_space<vmem>>, %arg8: memref<1x8xf32, #tpu.memory_space<vmem>>) attributes {dimension_semantics = [#tpu.dimension_semantics<parallel>], iteration_bounds = array<i64: 1>, scalar_prefetch = 0 : i64, scratch_operands = 0 : i64, tpu.core_type = #tpu.core_type<tc>, window_params = [{transform_indices = @transform_0, window_bounds = array<i64: 8, 32>}, {pipeline_mode = #tpu.pipeline_mode<synchronous>, transform_indices = @transform_1, window_bounds = array<i64: 2, 32, 32>}, {pipeline_mode = #tpu.pipeline_mode<synchronous>, transform_indices = @transform_2, window_bounds = array<i64: 2, 1, 32>}, {pipeline_mode = #tpu.pipeline_mode<synchronous>, transform_indices = @transform_3, window_bounds = array<i64: 2, 32, 32>}, {pipeline_mode = #tpu.pipeline_mode<synchronous>, transform_indices = @transform_4, window_bounds = array<i64: 2, 1, 32>}, {pipeline_mode = #tpu.pipeline_mode<synchronous>, transform_indices = @transform_5, window_bounds = array<i64: 2, 1, 32>}, {pipeline_mode = #tpu.pipeline_mode<synchronous>, transform_indices = @transform_6, window_bounds = array<i64: 2, 1>}, {transform_indices = @transform_7, window_bounds = array<i64: 1, 8>}]} {
    %c0 = arith.constant 0 : index
    %c0_0 = arith.constant 0 : index
    %0 = vector.load %arg1[%c0, %c0_0] : memref<8x32xbf16, #tpu.memory_space<vmem>>, vector<8x32xbf16>
    %1 = vector.shape_cast %0 : vector<8x32xbf16> to vector<1x8x32xbf16>
    %2 = vector.shape_cast %1 : vector<1x8x32xbf16> to vector<1x8x32xbf16>
    %3 = vector.broadcast %2 : vector<1x8x32xbf16> to vector<2x8x32xbf16>
    %c0_1 = arith.constant 0 : index
    %c0_2 = arith.constant 0 : index
    %c0_3 = arith.constant 0 : index
    %4 = vector.load %arg2[%c0_1, %c0_2, %c0_3] : memref<2x32x32xbf16, #tpu.memory_space<vmem>>, vector<2x32x32xbf16>
    "tpu.trace_start"() <{level = 10 : i32, message = "ebd,edh->ebh"}> : () -> ()
    %cst = arith.constant dense<0.000000e+00> : vector<2x8x32xf32>
    %5 = tpu.matmul %3, %4, %cst {dimension_numbers = #tpu.dot_dimension_numbers<[2], [1], [1], [2], [0, 0, 0, 1, 1, 2], [0], [0]>} : vector<2x8x32xbf16>, vector<2x32x32xbf16>, vector<2x8x32xf32> -> vector<2x8x32xf32>
    "tpu.trace_stop"() : () -> ()
    %c0_4 = arith.constant 0 : index
    %c0_5 = arith.constant 0 : index
    %c0_6 = arith.constant 0 : index
    %6 = vector.load %arg3[%c0_4, %c0_5, %c0_6] : memref<2x1x32xf32, #tpu.memory_space<vmem>>, vector<2x1x32xf32>
    %7 = vector.broadcast %6 : vector<2x1x32xf32> to vector<2x8x32xf32>
    %8 = arith.addf %5, %7 : vector<2x8x32xf32>
    %cst_7 = arith.constant 0.000000e+00 : f32
    %9 = vector.broadcast %cst_7 : f32 to vector<2x8x32xf32>
    %10 = arith.maximumf %8, %9 : vector<2x8x32xf32>
    %11 = arith.truncf %10 : vector<2x8x32xf32> to vector<2x8x32xbf16>
    %c0_8 = arith.constant 0 : index
    %c0_9 = arith.constant 0 : index
    %c0_10 = arith.constant 0 : index
    %12 = vector.load %arg4[%c0_8, %c0_9, %c0_10] : memref<2x32x32xbf16, #tpu.memory_space<vmem>>, vector<2x32x32xbf16>
    "tpu.trace_start"() <{level = 10 : i32, message = "ebh,ehk->ebk"}> : () -> ()
    %cst_11 = arith.constant dense<0.000000e+00> : vector<2x8x32xf32>
    %13 = tpu.matmul %11, %12, %cst_11 {dimension_numbers = #tpu.dot_dimension_numbers<[2], [1], [1], [2], [0, 0, 0, 1, 1, 2], [0], [0]>} : vector<2x8x32xbf16>, vector<2x32x32xbf16>, vector<2x8x32xf32> -> vector<2x8x32xf32>
    "tpu.trace_stop"() : () -> ()
    %c0_12 = arith.constant 0 : index
    %c0_13 = arith.constant 0 : index
    %c0_14 = arith.constant 0 : index
    %14 = vector.load %arg5[%c0_12, %c0_13, %c0_14] : memref<2x1x32xf32, #tpu.memory_space<vmem>>, vector<2x1x32xf32>
    %15 = vector.broadcast %14 : vector<2x1x32xf32> to vector<2x8x32xf32>
    %16 = arith.addf %13, %15 : vector<2x8x32xf32>
    %cst_15 = arith.constant 0.000000e+00 : f32
    %17 = vector.broadcast %cst_15 : f32 to vector<2x8x32xf32>
    %18 = arith.maximumf %16, %17 : vector<2x8x32xf32>
    %c0_16 = arith.constant 0 : index
    %c0_17 = arith.constant 0 : index
    %c0_18 = arith.constant 0 : index
    %19 = vector.load %arg6[%c0_16, %c0_17, %c0_18] : memref<2x1x32xf32, #tpu.memory_space<vmem>>, vector<2x1x32xf32>
    %20 = vector.broadcast %19 : vector<2x1x32xf32> to vector<2x8x32xf32>
    %21 = arith.mulf %18, %20 : vector<2x8x32xf32>
    %cst_19 = arith.constant dense<0.000000e+00> : vector<2x8xf32>
    %22 = vector.multi_reduction <add>, %21, %cst_19 [2] : vector<2x8x32xf32> to vector<2x8xf32>
    %c0_20 = arith.constant 0 : index
    %c0_21 = arith.constant 0 : index
    %23 = vector.load %arg7[%c0_20, %c0_21] : memref<2x1xf32, #tpu.memory_space<vmem>>, vector<2x1xf32>
    %24 = vector.broadcast %23 : vector<2x1xf32> to vector<2x8xf32>
    %25 = arith.addf %22, %24 : vector<2x8xf32>
    %cst_22 = arith.constant dense<0x7F800000> : vector<8xf32>
    %26 = vector.multi_reduction <minimumf>, %25, %cst_22 [0] : vector<2x8xf32> to vector<8xf32>
    %27 = vector.shape_cast %26 : vector<8xf32> to vector<1x8xf32>
    %c0_23 = arith.constant 0 : index
    %c0_24 = arith.constant 0 : index
    %28 = vector.load %arg8[%c0_23, %c0_24] : memref<1x8xf32, #tpu.memory_space<vmem>>, vector<1x8xf32>
    tpu.vector_store %arg8[%c0_23, %c0_24], %27 {strides = array<i32>} : memref<1x8xf32, #tpu.memory_space<vmem>>, vector<1x8xf32>,
    return
  }
  func.func @transform_0(%arg0: i32) -> (i32, i32) {
    %c0_i32 = arith.constant 0 : i32
    %c0_i32_0 = arith.constant 0 : i32
    return %arg0, %c0_i32 : i32, i32
  }
  func.func @transform_1(%arg0: i32) -> (i32, i32, i32) {
    %c0_i32 = arith.constant 0 : i32
    %c0_i32_0 = arith.constant 0 : i32
    %c0_i32_1 = arith.constant 0 : i32
    %c0_i32_2 = arith.constant 0 : i32
    return %c0_i32, %c0_i32_0, %c0_i32_1 : i32, i32, i32
  }
  func.func @transform_2(%arg0: i32) -> (i32, i32, i32) {
    %c0_i32 = arith.constant 0 : i32
    %c0_i32_0 = arith.constant 0 : i32
    %c0_i32_1 = arith.constant 0 : i32
    %c0_i32_2 = arith.constant 0 : i32
    return %c0_i32, %c0_i32_0, %c0_i32_1 : i32, i32, i32
  }
  func.func @transform_3(%arg0: i32) -> (i32, i32, i32) {
    %c0_i32 = arith.constant 0 : i32
    %c0_i32_0 = arith.constant 0 : i32
    %c0_i32_1 = arith.constant 0 : i32
    %c0_i32_2 = arith.constant 0 : i32
    return %c0_i32, %c0_i32_0, %c0_i32_1 : i32, i32, i32
  }
  func.func @transform_4(%arg0: i32) -> (i32, i32, i32) {
    %c0_i32 = arith.constant 0 : i32
    %c0_i32_0 = arith.constant 0 : i32
    %c0_i32_1 = arith.constant 0 : i32
    %c0_i32_2 = arith.constant 0 : i32
    return %c0_i32, %c0_i32_0, %c0_i32_1 : i32, i32, i32
  }
  func.func @transform_5(%arg0: i32) -> (i32, i32, i32) {
    %c0_i32 = arith.constant 0 : i32
    %c0_i32_0 = arith.constant 0 : i32
    %c0_i32_1 = arith.constant 0 : i32
    %c0_i32_2 = arith.constant 0 : i32
    return %c0_i32, %c0_i32_0, %c0_i32_1 : i32, i32, i32
  }
  func.func @transform_6(%arg0: i32) -> (i32, i32) {
    %c0_i32 = arith.constant 0 : i32
    %c0_i32_0 = arith.constant 0 : i32
    %c0_i32_1 = arith.constant 0 : i32
    return %c0_i32, %c0_i32_0 : i32, i32
  }
  func.func @transform_7(%arg0: i32) -> (i32, i32) {
    %c0_i32 = arith.constant 0 : i32
    %c0_i32_0 = arith.constant 0 : i32
    return %c0_i32, %arg0 : i32, i32
  }
}

</mosaic_0001>

<llo_original>
// kernel: tpu_custom_call.1
$region0: #{tpu_custom_call.1}
  #allocation0 [shape = 'u32[]', space=smem, size = 0x4, offset = 0x4, fixed_abs, tag = 'smem constant byte address 0x4 - core index']
  #allocation1 [shape = 'u32[144,128]{1,0:T(1,128)}', space=vmem, size = 0x12000, scoped, tag = 'internal scratch']
  %s0 = inlined_call_operand.hbm [shape: bf16[8,32], index: 0, kind: input, shape index: {}]
  %s1 = inlined_call_operand.hbm [shape: bf16[2,32,32], index: 1, kind: input, shape index: {}]
  %s2 = inlined_call_operand.vmem [shape: f32[2,1,32], index: 2, kind: input, shape index: {}]
  %s3 = inlined_call_operand.hbm [shape: bf16[2,32,32], index: 3, kind: input, shape index: {}]
  %s4 = inlined_call_operand.vmem [shape: f32[2,1,32], index: 4, kind: input, shape index: {}]
  %s5 = inlined_call_operand.vmem [shape: f32[2,1,32], index: 5, kind: input, shape index: {}]
  %s6 = inlined_call_operand.vmem [shape: f32[2,1], index: 6, kind: input, shape index: {}]
  %s7 = inlined_call_operand.hbm [shape: f32[1,8], index: 7, kind: output, shape index: {}]
  %s8 = sld [smem:[#allocation0]]
  $region50: #{tpu_custom_call.1} parent=0
    _
  %s10 = ssub.s32 1, %s8
  %s11 = scalar_select 0, %s10, %s8
  $region1: #{tpu_custom_call.1} parent=0
    #allocation2 [shape = 'u8[2048]{0}', space=vmem, size = 0x800, scoped, tag = 'input window, operand 0, single buffered']
    #allocation3 [shape = 's32[1]{0}', space=sflag, size = 0x4, scoped, tag = 'scoped memory for tpu_custom_call.1']
    #allocation4 [shape = 's32[1]{0}', space=sflag, size = 0x4, scoped, tag = 'scoped memory for tpu_custom_call.1']
    #allocation5 [shape = 'u8[16384]{0}', space=vmem, size = 0x4000, scoped, tag = 'input window, operand 1, single buffered']
    #allocation6 [shape = 's32[1]{0}', space=sflag, size = 0x4, scoped, tag = 'scoped memory for tpu_custom_call.1']
    #allocation7 [shape = 'u8[16384]{0}', space=vmem, size = 0x4000, scoped, tag = 'input window, operand 3, single buffered']
    #allocation8 [shape = 'u8[512]{0}', space=vmem, size = 0x400, scoped, tag = 'output window, operand 0, single buffered']
    %12 = vsyncpa [#allocation3], 0
    %13 = vsyncpa [#allocation6], 0
    %14 = vsyncpa [#allocation4], 0
    // Predicated region
    $region2: #{tpu_custom_call.1} parent=1 // pred_check
      _
    $region3: #{tpu_custom_call.1} parent=1 // pred_check_branch
      %16 = sbr.rel (0) target = $region5
    $region4: #{tpu_custom_call.1} parent=1 // pred_region
      %s18 = ssub.s32 64, 64
      %19 = vsyncadd [#allocation3], %s18
      %s21 = sshll.u32 [#allocation2], 4
      %s22 = int_to_ptr.vmem [resolvable:$true] %s21
      %24 = dma.hbm_to_vmem [thread:$0]  %s0, 64, %s22, [#allocation3]
    $region5: #{tpu_custom_call.1} parent=1 // pred_fallthru
      _
    // Predicated region
    $region6: #{tpu_custom_call.1} parent=1 // pred_check
      _
    $region7: #{tpu_custom_call.1} parent=1 // pred_check_branch
      %26 = sbr.rel (0) target = $region9
    $region8: #{tpu_custom_call.1} parent=1 // pred_region
      %s28 = ssub.s32 512, 512
      %29 = vsyncadd [#allocation6], %s28
      %s30 = sshll.u32 [#allocation5], 4
      %s31 = int_to_ptr.vmem [resolvable:$true] %s30
      %36 = dma.hbm_to_vmem [thread:$0]  %s1, 512, %s31, [#allocation6], 64, 64, 4
    $region9: #{tpu_custom_call.1} parent=1 // pred_fallthru
      _
    // Predicated region
    $region10: #{tpu_custom_call.1} parent=1 // pred_check
      _
    $region11: #{tpu_custom_call.1} parent=1 // pred_check_branch
      %38 = sbr.rel (0) target = $region13
    $region12: #{tpu_custom_call.1} parent=1 // pred_region
      _
    $region13: #{tpu_custom_call.1} parent=1 // pred_fallthru
      _
    // Predicated region
    $region14: #{tpu_custom_call.1} parent=1 // pred_check
      _
    $region15: #{tpu_custom_call.1} parent=1 // pred_check_branch
      %40 = sbr.rel (0) target = $region17
    $region16: #{tpu_custom_call.1} parent=1 // pred_region
      %s42 = ssub.s32 512, 512
      %43 = vsyncadd [#allocation6], %s42
      %s44 = sshll.u32 [#allocation7], 4
      %s45 = int_to_ptr.vmem [resolvable:$true] %s44
      %50 = dma.hbm_to_vmem [thread:$0]  %s3, 512, %s45, [#allocation6], 64, 64, 4
    $region17: #{tpu_custom_call.1} parent=1 // pred_fallthru
      _
    // Predicated region
    $region18: #{tpu_custom_call.1} parent=1 // pred_check
      _
    $region19: #{tpu_custom_call.1} parent=1 // pred_check_branch
      %52 = sbr.rel (0) target = $region21
    $region20: #{tpu_custom_call.1} parent=1 // pred_region
      _
    $region21: #{tpu_custom_call.1} parent=1 // pred_fallthru
      _
    // Predicated region
    $region22: #{tpu_custom_call.1} parent=1 // pred_check
      _
    $region23: #{tpu_custom_call.1} parent=1 // pred_check_branch
      %54 = sbr.rel (0) target = $region25
    $region24: #{tpu_custom_call.1} parent=1 // pred_region
      _
    $region25: #{tpu_custom_call.1} parent=1 // pred_fallthru
      _
    // Predicated region
    $region26: #{tpu_custom_call.1} parent=1 // pred_check
      _
    $region27: #{tpu_custom_call.1} parent=1 // pred_check_branch
      %56 = sbr.rel (0) target = $region29
    $region28: #{tpu_custom_call.1} parent=1 // pred_region
      _
    $region29: #{tpu_custom_call.1} parent=1 // pred_fallthru
      _
    // Predicated region
    $region30: #{tpu_custom_call.1} parent=1 // pred_check
      _
    $region31: #{tpu_custom_call.1} parent=1 // pred_check_branch
      %58 = sbr.rel (0) target = $region33
    $region32: #{tpu_custom_call.1} parent=1 // pred_region
      %59 = dma.done [#allocation3], 64
    $region33: #{tpu_custom_call.1} parent=1 // pred_fallthru
      _
    // Predicated region
    $region34: #{tpu_custom_call.1} parent=1 // pred_check
      _
    $region35: #{tpu_custom_call.1} parent=1 // pred_check_branch
      %61 = sbr.rel (0) target = $region37
    $region36: #{tpu_custom_call.1} parent=1 // pred_region
      %62 = dma.done [#allocation6], 512
    $region37: #{tpu_custom_call.1} parent=1 // pred_fallthru
      _
    // Predicated region
    $region38: #{tpu_custom_call.1} parent=1 // pred_check
      _
    $region39: #{tpu_custom_call.1} parent=1 // pred_check_branch
      %64 = sbr.rel (0) target = $region41
    $region40: #{tpu_custom_call.1} parent=1 // pred_region
      %65 = dma.done [#allocation6], 512
    $region41: #{tpu_custom_call.1} parent=1 // pred_fallthru
      _
    %v67 = vld [vmem:[#allocation2] sm:$0xf]
    %v68 = vld [vmem:[#allocation5] sm:$0xf]
    %v69 = vld [vmem:[#allocation5 + $0x4] sm:$0xf]
    %v70 = vld [vmem:[#allocation5 + $0x8] sm:$0xf]
    %v71 = vld [vmem:[#allocation5 + $0xc] sm:$0xf]
    %v72 = vld [vmem:[#allocation5 + $0x10] sm:$0xf]
    %v73 = vld [vmem:[#allocation5 + $0x14] sm:$0xf]
    %v74 = vld [vmem:[#allocation5 + $0x18] sm:$0xf]
    %v75 = vld [vmem:[#allocation5 + $0x1c] sm:$0xf]
    %v76 = vld [vmem:[%s2] sm:$0x1]
    %v77 = vld [vmem:[%s2 + $0x1] sm:$0x1]
    %v80 = vlaneseq
    %v81 = vshrl.u32 %v80, 7
    %v82 = vsub.s32 0, %v81
    %v83 = vrot.slane %v76, %v82
    %v84 = vlaneseq
    %v85 = vshrl.u32 %v84, 7
    %v86 = vsub.s32 0, %v85
    %v87 = vrot.slane %v77, %v86
    %v94 = vunpack.c.l.b16 %v68
    %v95 = vunpack.c.l.b16 %v69
    %v96 = vunpack.c.l.b16 %v70
    %v97 = vunpack.c.l.b16 %v71
    %v98 = vpack.c.b16 %v95, %v94
    %v99 = vpack.c.b16 %v97, %v96
    %vm102 = vcmask 261120
    %v104 = vsel %vm102, %v67, 0
    %106 = vmatprep.subr.bf16.mxu0 0
    %107 = vmatpush1.bf16.msra.mxu0 %v98
    %108 = vmatprep.subr.bf16.mxu0 0
    %109 = vmatpush1.bf16.msra.mxu0 %v99
    %110 = vmatprep.subr.bf16.mxu0 0
    %111 = vmatpush1.bf16.msra.mxu0 0
    %112 = vmatprep.subr.bf16.mxu0 0
    %113 = vmatpush1.bf16.msra.mxu0 0
    %114 = vmatprep.subr.bf16.mxu0 0
    %115 = vmatpush1.bf16.msra.mxu0 0
    %116 = vmatprep.subr.bf16.mxu0 0
    %117 = vmatpush1.bf16.msra.mxu0 0
    %118 = vmatprep.subr.bf16.mxu0 0
    %119 = vmatpush1.bf16.msra.mxu0 0
    %120 = vmatprep.subr.bf16.mxu0 0
    %121 = vmatpush1.bf16.msra.mxu0 0
    %122 = vmatprep.subr.bf16.mxu0 0
    %123 = vmatpush1.bf16.msra.mxu0 0
    %124 = vmatprep.subr.bf16.mxu0 0
    %125 = vmatpush1.bf16.msra.mxu0 0
    %126 = vmatprep.subr.bf16.mxu0 0
    %127 = vmatpush1.bf16.msra.mxu0 0
    %128 = vmatprep.subr.bf16.mxu0 0
    %129 = vmatpush1.bf16.msra.mxu0 0
    %130 = vmatprep.subr.bf16.mxu0 0
    %131 = vmatpush1.bf16.msra.mxu0 0
    %132 = vmatprep.subr.bf16.mxu0 0
    %133 = vmatpush1.bf16.msra.mxu0 0
    %134 = vmatprep.subr.bf16.mxu0 0
    %135 = vmatpush1.bf16.msra.mxu0 0
    %136 = vmatprep.subr.bf16.mxu0 0
    %137 = vmatpush1.bf16.msra.mxu0 0
    %138 = vmatprep.mubr.bf16.mxu0 0
    %139 = vmatmul.mubr.bf16.gmra.mrb[0].mxu0 %v104
    %v140 = vpop.f32.mrb[0].mxu0
    %v141 = vadd.f32 %v83, %v140
    %v142 = vpop.f32.mrb[0].mxu0
    %v143 = vpop.f32.mrb[0].mxu0
    %v144 = vpop.f32.mrb[0].mxu0
    %145 = vdwg.mxu0
    %v150 = vunpack.c.l.b16 %v72
    %v151 = vunpack.c.l.b16 %v73
    %v152 = vunpack.c.l.b16 %v74
    %v153 = vunpack.c.l.b16 %v75
    %v154 = vpack.c.b16 %v151, %v150
    %v155 = vpack.c.b16 %v153, %v152
    %158 = vmatprep.subr.bf16.mxu0 0
    %159 = vmatpush1.bf16.msra.mxu0 %v154
    %160 = vmatprep.subr.bf16.mxu0 0
    %161 = vmatpush1.bf16.msra.mxu0 %v155
    %162 = vmatprep.subr.bf16.mxu0 0
    %163 = vmatpush1.bf16.msra.mxu0 0
    %164 = vmatprep.subr.bf16.mxu0 0
    %165 = vmatpush1.bf16.msra.mxu0 0
    %166 = vmatprep.subr.bf16.mxu0 0
    %167 = vmatpush1.bf16.msra.mxu0 0
    %168 = vmatprep.subr.bf16.mxu0 0
    %169 = vmatpush1.bf16.msra.mxu0 0
    %170 = vmatprep.subr.bf16.mxu0 0
    %171 = vmatpush1.bf16.msra.mxu0 0
    %172 = vmatprep.subr.bf16.mxu0 0
    %173 = vmatpush1.bf16.msra.mxu0 0
    %174 = vmatprep.subr.bf16.mxu0 0
    %175 = vmatpush1.bf16.msra.mxu0 0
    %176 = vmatprep.subr.bf16.mxu0 0
    %177 = vmatpush1.bf16.msra.mxu0 0
    %178 = vmatprep.subr.bf16.mxu0 0
    %179 = vmatpush1.bf16.msra.mxu0 0
    %180 = vmatprep.subr.bf16.mxu0 0
    %181 = vmatpush1.bf16.msra.mxu0 0
    %182 = vmatprep.subr.bf16.mxu0 0
    %183 = vmatpush1.bf16.msra.mxu0 0
    %184 = vmatprep.subr.bf16.mxu0 0
    %185 = vmatpush1.bf16.msra.mxu0 0
    %186 = vmatprep.subr.bf16.mxu0 0
    %187 = vmatpush1.bf16.msra.mxu0 0
    %188 = vmatprep.subr.bf16.mxu0 0
    %189 = vmatpush1.bf16.msra.mxu0 0
    %190 = vmatprep.mubr.bf16.mxu0 0
    %191 = vmatmul.mubr.bf16.gmra.mrb[0].mxu0 %v104
    %v192 = vpop.f32.mrb[0].mxu0
    %v193 = vadd.f32 %v87, %v192
    %v194 = vpop.f32.mrb[0].mxu0
    %v195 = vpop.f32.mrb[0].mxu0
    %v196 = vpop.f32.mrb[0].mxu0
    %197 = vdwg.mxu0
    %v198 = vmax.f32 %v141, 0.0
    %v199 = vmax.f32 %v193, 0.0
    %v200 = vpack.c.bf16 %v198, %v198
    %v201 = vpack.c.bf16 %v199, %v199
    %v202 = vld [vmem:[#allocation7] sm:$0xf]
    %v203 = vld [vmem:[#allocation7 + $0x4] sm:$0xf]
    %v204 = vld [vmem:[#allocation7 + $0x8] sm:$0xf]
    %v205 = vld [vmem:[#allocation7 + $0xc] sm:$0xf]
    %v206 = vld [vmem:[#allocation7 + $0x10] sm:$0xf]
    %v207 = vld [vmem:[#allocation7 + $0x14] sm:$0xf]
    %v208 = vld [vmem:[#allocation7 + $0x18] sm:$0xf]
    %v209 = vld [vmem:[#allocation7 + $0x1c] sm:$0xf]
    %v210 = vld [vmem:[%s4] sm:$0x1]
    %v211 = vld [vmem:[%s4 + $0x1] sm:$0x1]
    %v214 = vlaneseq
    %v215 = vshrl.u32 %v214, 7
    %v216 = vsub.s32 0, %v215
    %v217 = vrot.slane %v210, %v216
    %v218 = vlaneseq
    %v219 = vshrl.u32 %v218, 7
    %v220 = vsub.s32 0, %v219
    %v221 = vrot.slane %v211, %v220
    %v228 = vunpack.c.l.b16 %v202
    %v229 = vunpack.c.l.b16 %v203
    %v230 = vunpack.c.l.b16 %v204
    %v231 = vunpack.c.l.b16 %v205
    %v232 = vpack.c.b16 %v229, %v228
    %v233 = vpack.c.b16 %v231, %v230
    %v237 = vsel %vm102, %v200, 0
    %239 = vmatprep.subr.bf16.mxu0 0
    %240 = vmatpush1.bf16.msra.mxu0 %v232
    %241 = vmatprep.subr.bf16.mxu0 0
    %242 = vmatpush1.bf16.msra.mxu0 %v233
    %243 = vmatprep.subr.bf16.mxu0 0
    %244 = vmatpush1.bf16.msra.mxu0 0
    %245 = vmatprep.subr.bf16.mxu0 0
    %246 = vmatpush1.bf16.msra.mxu0 0
    %247 = vmatprep.subr.bf16.mxu0 0
    %248 = vmatpush1.bf16.msra.mxu0 0
    %249 = vmatprep.subr.bf16.mxu0 0
    %250 = vmatpush1.bf16.msra.mxu0 0
    %251 = vmatprep.subr.bf16.mxu0 0
    %252 = vmatpush1.bf16.msra.mxu0 0
    %253 = vmatprep.subr.bf16.mxu0 0
    %254 = vmatpush1.bf16.msra.mxu0 0
    %255 = vmatprep.subr.bf16.mxu0 0
    %256 = vmatpush1.bf16.msra.mxu0 0
    %257 = vmatprep.subr.bf16.mxu0 0
    %258 = vmatpush1.bf16.msra.mxu0 0
    %259 = vmatprep.subr.bf16.mxu0 0
    %260 = vmatpush1.bf16.msra.mxu0 0
    %261 = vmatprep.subr.bf16.mxu0 0
    %262 = vmatpush1.bf16.msra.mxu0 0
    %263 = vmatprep.subr.bf16.mxu0 0
    %264 = vmatpush1.bf16.msra.mxu0 0
    %265 = vmatprep.subr.bf16.mxu0 0
    %266 = vmatpush1.bf16.msra.mxu0 0
    %267 = vmatprep.subr.bf16.mxu0 0
    %268 = vmatpush1.bf16.msra.mxu0 0
    %269 = vmatprep.subr.bf16.mxu0 0
    %270 = vmatpush1.bf16.msra.mxu0 0
    %271 = vmatprep.mubr.bf16.mxu0 0
    %272 = vmatmul.mubr.bf16.gmra.mrb[0].mxu0 %v237
    %v273 = vpop.f32.mrb[0].mxu0
    %v274 = vadd.f32 %v217, %v273
    %v275 = vpop.f32.mrb[0].mxu0
    %v276 = vpop.f32.mrb[0].mxu0
    %v277 = vpop.f32.mrb[0].mxu0
    %278 = vdwg.mxu0
    %v283 = vunpack.c.l.b16 %v206
    %v284 = vunpack.c.l.b16 %v207
    %v285 = vunpack.c.l.b16 %v208
    %v286 = vunpack.c.l.b16 %v209
    %v287 = vpack.c.b16 %v284, %v283
    %v288 = vpack.c.b16 %v286, %v285
    %v292 = vsel %vm102, %v201, 0
    %294 = vmatprep.subr.bf16.mxu0 0
    %295 = vmatpush1.bf16.msra.mxu0 %v287
    %296 = vmatprep.subr.bf16.mxu0 0
    %297 = vmatpush1.bf16.msra.mxu0 %v288
    %298 = vmatprep.subr.bf16.mxu0 0
    %299 = vmatpush1.bf16.msra.mxu0 0
    %300 = vmatprep.subr.bf16.mxu0 0
    %301 = vmatpush1.bf16.msra.mxu0 0
    %302 = vmatprep.subr.bf16.mxu0 0
    %303 = vmatpush1.bf16.msra.mxu0 0
    %304 = vmatprep.subr.bf16.mxu0 0
    %305 = vmatpush1.bf16.msra.mxu0 0
    %306 = vmatprep.subr.bf16.mxu0 0
    %307 = vmatpush1.bf16.msra.mxu0 0
    %308 = vmatprep.subr.bf16.mxu0 0
    %309 = vmatpush1.bf16.msra.mxu0 0
    %310 = vmatprep.subr.bf16.mxu0 0
    %311 = vmatpush1.bf16.msra.mxu0 0
    %312 = vmatprep.subr.bf16.mxu0 0
    %313 = vmatpush1.bf16.msra.mxu0 0
    %314 = vmatprep.subr.bf16.mxu0 0
    %315 = vmatpush1.bf16.msra.mxu0 0
    %316 = vmatprep.subr.bf16.mxu0 0
    %317 = vmatpush1.bf16.msra.mxu0 0
    %318 = vmatprep.subr.bf16.mxu0 0
    %319 = vmatpush1.bf16.msra.mxu0 0
    %320 = vmatprep.subr.bf16.mxu0 0
    %321 = vmatpush1.bf16.msra.mxu0 0
    %322 = vmatprep.subr.bf16.mxu0 0
    %323 = vmatpush1.bf16.msra.mxu0 0
    %324 = vmatprep.subr.bf16.mxu0 0
    %325 = vmatpush1.bf16.msra.mxu0 0
    %326 = vmatprep.mubr.bf16.mxu0 0
    %327 = vmatmul.mubr.bf16.gmra.mrb[0].mxu0 %v292
    %v328 = vpop.f32.mrb[0].mxu0
    %v329 = vadd.f32 %v221, %v328
    %v330 = vpop.f32.mrb[0].mxu0
    %v331 = vpop.f32.mrb[0].mxu0
    %v332 = vpop.f32.mrb[0].mxu0
    %333 = vdwg.mxu0
    %v334 = vmax.f32 %v274, 0.0
    %v335 = vmax.f32 %v329, 0.0
    %v336 = vld [vmem:[%s5] sm:$0x1]
    %v337 = vld [vmem:[%s5 + $0x1] sm:$0x1]
    %v340 = vlaneseq
    %v341 = vshrl.u32 %v340, 7
    %v342 = vsub.s32 0, %v341
    %v343 = vrot.slane %v336, %v342
    %v344 = vlaneseq
    %v345 = vshrl.u32 %v344, 7
    %v346 = vsub.s32 0, %v345
    %v347 = vrot.slane %v337, %v346
    %v350 = vmul.f32 %v334, %v343
    %v351 = vmul.f32 %v335, %v347
    %v352 = vsel %vm102, %v350, 0.0
    %353 = vadd.xlane.f32.xlu0 %v352
    %v354 = vpop.xlane.xlu0 %353
    %v355 = vsel %vm102, %v351, 0.0
    %356 = vadd.xlane.f32.xlu0 %v355
    %v357 = vpop.xlane.xlu0 %356
    %v358 = vld [vmem:[%s6] sm:$0x3]
    %360 = vset.pattern.permute.xlu0 0
    %361 = vperm.xlu0 %360, %v358
    %v362 = vpop.permute.xlu0 %361
    %v363 = vlaneseq
    %v364 = vshrl.u32 %v363, 7
    %v365 = vsub.s32 0, %v364
    %v366 = vrot.slane %v362, %v365
    %v367 = vlaneseq
    %v368 = vshrl.u32 %v367, 7
    %v369 = vsub.s32 1, %v368
    %v370 = vrot.slane %v362, %v369
    %v373 = vadd.f32 %v354, %v366
    %v374 = vadd.f32 %v357, %v370
    %vm375 = vcmask 7168
    %v376 = vsel %vm375, %v373, inf
    %v377 = vsel %vm375, %v374, inf
    %v378 = vmin.f32 %v376, %v377
    %380 = vset.pattern.permute.xlu0 0
    %381 = vperm.xlu0 %380, %v378
    %v382 = vpop.permute.xlu0 %381
    %v383 = vlaneseq
    %v384 = vand.u32 %v383, 127
    %v385 = vlaneseq
    %v386 = vshrl.u32 %v385, 7
    %v387 = vsub.s32 %v384, %v386
    %v388 = vrot.slane %v382, %v387
    %vm390 = vcmask 57344
    %391 = vst.msk [vmem:[#allocation8] sm:$0x1] %vm390, %v388
    // Predicated region
    $region42: #{tpu_custom_call.1} parent=1 // pred_check
      _
    $region43: #{tpu_custom_call.1} parent=1 // pred_check_branch
      %393 = sbr.rel (0) target = $region45
    $region44: #{tpu_custom_call.1} parent=1 // pred_region
      %s395 = ssub.s32 16, 16
      %396 = vsyncadd [#allocation4], %s395
      %s398 = sshll.u32 [#allocation8], 4
      %s399 = int_to_ptr.vmem [resolvable:$true] %s398
      %401 = dma.vmem_to_hbm [thread:$0]  %s399, 16, %s7, [#allocation4]
    $region45: #{tpu_custom_call.1} parent=1 // pred_fallthru
      _
    // Predicated region
    $region46: #{tpu_custom_call.1} parent=1 // pred_check
      _
    $region47: #{tpu_custom_call.1} parent=1 // pred_check_branch
      %403 = sbr.rel (0) target = $region49
    $region48: #{tpu_custom_call.1} parent=1 // pred_region
      %404 = dma.done [#allocation4], 16
    $region49: #{tpu_custom_call.1} parent=1 // pred_fallthru
      _
    %405 = vsyncpa [#allocation3], 1
    %406 = vsyncpa [#allocation6], 1
    %407 = vsyncpa [#allocation4], 1

</llo_original>
